<compile_context>
chip_gen: v7x
topology: tpu7x:2x2x1
jax: 0.10.0
libtpu: 0.0.40
codegen_flags: <defaults>
</compile_context>

<pallas_src>
import math
import jax
import jax.numpy as jnp
from jax.experimental import pallas as pl
from jax.experimental.pallas import tpu as pltpu


def _round_up(x, m):
    return ((x + m - 1) // m) * m


def _message_passing_kernel(e_ref, idx_ref, we_ref, hcat_ref, o_ref):
    """o = e @ We^T + hu_proj[src] + hw_proj[tgt]   (f32 accumulation).

    e_ref:    [tile_e, edge_dim]       edge features (operand dtype, e.g. bf16)
    idx_ref:  [tile_e, 2] int32        col 0 = src node id, col 1 = tgt node id
    we_ref:   [edge_dim, out_dim]      W_e^T, VMEM-resident
    hcat_ref: [2*num_nodes, out_dim]   [h @ W_hu^T ; h @ W_hw^T], VMEM-resident
    o_ref:    [tile_e, out_dim]
    """
    tile_e = e_ref.shape[0]
    two_nodes = hcat_ref.shape[0]
    num_nodes = two_nodes // 2

    idx = idx_ref[...]                       # [tile_e, 2] int32
    src = idx[:, 0:1]                        # [tile_e, 1]
    tgt = idx[:, 1:2]                        # [tile_e, 1]

    # Combined one-hot selector: exactly two ones per edge row (src in the first
    # num_nodes columns, tgt in the second half).  The MXU then performs the
    # gather + add of the two projected node rows in a single pass.
    node_iota = jax.lax.broadcasted_iota(jnp.int32, (tile_e, two_nodes), 1)
    onehot = jnp.logical_or(node_iota == src,
                            node_iota == tgt + num_nodes)
    onehot = onehot.astype(jnp.float32).astype(hcat_ref.dtype)

    acc = jnp.dot(e_ref[...], we_ref[...], preferred_element_type=jnp.float32)
    acc = acc + jnp.dot(onehot, hcat_ref[...], preferred_element_type=jnp.float32)
    o_ref[...] = acc.astype(o_ref.dtype)


def message_passing_layer(h, edge_index, e, W_e, W_hu, W_hw, *,
                          tile_e=None, operand_dtype=jnp.bfloat16,
                          out_dtype=None):
    """JAX wrapper reproducing MessagePassingLayer.forward.

    h:          [num_nodes, in_dim]
    edge_index: [2, num_edges] integer
    e:          [num_edges, edge_dim]
    W_e:        [out_dim, edge_dim]   (PyTorch nn.Linear weight layout)
    W_hu, W_hw: [out_dim, in_dim]
    Returns [num_edges, out_dim] in out_dtype (default: h.dtype).
    Default operand_dtype=bf16 (f32 accumulation) halves HBM bytes; pass
    operand_dtype=jnp.float32 for exact f32 numerics.
    """
    num_edges, edge_dim = e.shape
    num_nodes = h.shape[0]
    out_dim = W_e.shape[0]
    if out_dtype is None:
        out_dtype = h.dtype

    # Pre-project node features ONCE per node (tiny [num_nodes, out_dim]
    # matmuls); the per-edge gather of these rows happens inside the kernel.
    hu_proj = jnp.dot(h, W_hu.T, preferred_element_type=jnp.float32)
    hw_proj = jnp.dot(h, W_hw.T, preferred_element_type=jnp.float32)
    hcat = jnp.concatenate([hu_proj, hw_proj], axis=0).astype(operand_dtype)

    we_t = W_e.T.astype(operand_dtype)                   # [edge_dim, out_dim]
    e_in = e.astype(operand_dtype)                       # [num_edges, edge_dim]
    idx = jnp.transpose(edge_index).astype(jnp.int32)    # [num_edges, 2]

    # Row tiling: multiple of 16 (valid for bf16 and f32 sublane packing);
    # default 512 rows => many pipelined grid steps on real graphs (megacore
    # sharding on v7x), small per-step VMEM footprint.
    if tile_e is None:
        tile_e = 512
    tile_e = int(min(_round_up(tile_e, 16), _round_up(num_edges, 16)))
    padded_edges = _round_up(num_edges, tile_e)
    pad = padded_edges - num_edges
    if pad:
        e_in = jnp.pad(e_in, ((0, pad), (0, 0)))
        idx = jnp.pad(idx, ((0, pad), (0, 0)))           # pads with node 0 (valid)

    grid = (padded_edges // tile_e,)
    op_bytes = jnp.dtype(operand_dtype).itemsize
    out_bytes = jnp.dtype(out_dtype).itemsize
    cost = pl.CostEstimate(
        flops=2 * padded_edges * (edge_dim + 2 * num_nodes) * out_dim,
        transcendentals=0,
        bytes_accessed=(padded_edges * edge_dim * op_bytes        # e
                        + padded_edges * 2 * 4                    # src/tgt indices
                        + edge_dim * out_dim * op_bytes           # We^T
                        + 2 * num_nodes * out_dim * op_bytes      # node tables
                        + padded_edges * out_dim * out_bytes),    # output
    )

    out = pl.pallas_call(
        _message_passing_kernel,
        out_shape=jax.ShapeDtypeStruct((padded_edges, out_dim), out_dtype),
        grid_spec=pltpu.PrefetchScalarGridSpec(
            num_scalar_prefetch=0,
            grid=grid,
            in_specs=[
                pl.BlockSpec((tile_e, edge_dim), lambda i: (i, 0)),        # e tile
                pl.BlockSpec((tile_e, 2), lambda i: (i, 0)),               # src/tgt ids
                pl.BlockSpec((edge_dim, out_dim), lambda i: (0, 0)),       # We^T (resident)
                pl.BlockSpec((2 * num_nodes, out_dim), lambda i: (0, 0)),  # node tables (resident)
            ],
            out_specs=pl.BlockSpec((tile_e, out_dim), lambda i: (i, 0)),
        ),
        compiler_params=pltpu.CompilerParams(
            dimension_semantics=("parallel",)),
        cost_estimate=cost,
    )(e_in, idx, we_t, hcat)
    return out[:num_edges]


def kaiming_uniform(key, out_dim, in_dim, a=0.01, dtype=jnp.float32):
    """Deterministic replica of nn.init.kaiming_uniform_ (leaky_relu) bounds."""
    gain = math.sqrt(2.0 / (1.0 + a * a))
    bound = gain * math.sqrt(3.0 / in_dim)
    return jax.random.uniform(key, (out_dim, in_dim), dtype=dtype,
                              minval=-bound, maxval=bound)


if __name__ == "__main__":
    # Small shapes consistent with the module's forward.
    num_nodes = 16
    num_edges = 72          # not a multiple of 16 -> exercises the padding path
    in_dim = 32             # node_embedding_dim
    edge_dim = 16           # edge_embedding_dim
    out_dim = 32

    key = jax.random.PRNGKey(0)
    k_h, k_e, k_src, k_tgt, k_we, k_whu, k_whw = jax.random.split(key, 7)

    h = jax.random.normal(k_h, (num_nodes, in_dim), dtype=jnp.float32)
    e = jax.random.normal(k_e, (num_edges, edge_dim), dtype=jnp.float32)
    src = jax.random.randint(k_src, (num_edges,), 0, num_nodes, dtype=jnp.int32)
    tgt = jax.random.randint(k_tgt, (num_edges,), 0, num_nodes, dtype=jnp.int32)
    edge_index = jnp.stack([src, tgt], axis=0)  # [2, num_edges]

    # Deterministic parameter init (nn.Linear weight layout: [out, in]).
    W_e = kaiming_uniform(k_we, out_dim, edge_dim)
    W_hu = kaiming_uniform(k_whu, out_dim, in_dim)
    W_hw = kaiming_uniform(k_whw, out_dim, in_dim)

    # Default path: bf16 operands, f32 accumulation, single tile (72 -> 80 rows).
    messages = message_passing_layer(h, edge_index, e, W_e, W_hu, W_hw)
    messages = jax.block_until_ready(messages)
    assert messages.shape == (num_edges, out_dim)
    assert messages.dtype == jnp.float32

    # Multi-tile grid (exercises tiling + padding + resident-weight reuse).
    messages_tiled = message_passing_layer(h, edge_index, e, W_e, W_hu, W_hw,
                                           tile_e=16)
    messages_tiled = jax.block_until_ready(messages_tiled)

    # Tight reference with the SAME bf16 operand rounding (f32 accumulation).
    hu_b = jnp.dot(h, W_hu.T).astype(jnp.bfloat16).astype(jnp.float32)
    hw_b = jnp.dot(h, W_hw.T).astype(jnp.bfloat16).astype(jnp.float32)
    e_b = e.astype(jnp.bfloat16).astype(jnp.float32)
    we_b = W_e.T.astype(jnp.bfloat16).astype(jnp.float32)
    ref_q = jnp.dot(e_b, we_b) + hu_b[src] + hw_b[tgt]
    assert jnp.allclose(messages, ref_q, atol=5e-3, rtol=5e-3)
    assert jnp.allclose(messages_tiled, ref_q, atol=5e-3, rtol=5e-3)

    # Loose check against the exact f32 module math (bf16 rounding tolerance).
    ref_f32 = (jnp.dot(e, W_e.T, precision=jax.lax.Precision.HIGHEST)
               + jnp.dot(h, W_hu.T, precision=jax.lax.Precision.HIGHEST)[src]
               + jnp.dot(h, W_hw.T, precision=jax.lax.Precision.HIGHEST)[tgt])
    assert jnp.allclose(messages, ref_f32, atol=0.25, rtol=0.05)

    print("KERNEL_OK")
</pallas_src>

<mosaic_0001>
module attributes {stable_mosaic.version = 11 : i64} {
  func.func @_message_passing_kernel(%arg0: i32, %arg1: memref<80x16xbf16, #tpu.memory_space<vmem>>, %arg2: memref<80x2xi32, #tpu.memory_space<vmem>>, %arg3: memref<16x32xbf16, #tpu.memory_space<vmem>>, %arg4: memref<32x32xbf16, #tpu.memory_space<vmem>>, %arg5: memref<80x32xf32, #tpu.memory_space<vmem>>) attributes {dimension_semantics = [#tpu.dimension_semantics<parallel>], iteration_bounds = array<i64: 1>, scalar_prefetch = 0 : i64, scratch_operands = 0 : i64, tpu.core_type = #tpu.core_type<tc>, window_params = [{transform_indices = @transform_0, window_bounds = array<i64: 80, 16>}, {transform_indices = @transform_1, window_bounds = array<i64: 80, 2>}, {pipeline_mode = #tpu.pipeline_mode<synchronous>, transform_indices = @transform_2, window_bounds = array<i64: 16, 32>}, {pipeline_mode = #tpu.pipeline_mode<synchronous>, transform_indices = @transform_3, window_bounds = array<i64: 32, 32>}, {transform_indices = @transform_4, window_bounds = array<i64: 80, 32>}]} {
    %c0 = arith.constant 0 : index
    %c0_0 = arith.constant 0 : index
    %0 = vector.load %arg2[%c0, %c0_0] : memref<80x2xi32, #tpu.memory_space<vmem>>, vector<80x2xi32>
    %1 = vector.extract_strided_slice %0 {offsets = [0, 0], sizes = [80, 1], strides = [1, 1]} : vector<80x2xi32> to vector<80x1xi32>
    %2 = vector.extract_strided_slice %0 {offsets = [0, 1], sizes = [80, 1], strides = [1, 1]} : vector<80x2xi32> to vector<80x1xi32>
    %3 = tpu.iota {dimensions = array<i32: 1>} : vector<80x32xi32>
    %4 = vector.broadcast %1 : vector<80x1xi32> to vector<80x32xi32>
    %5 = arith.cmpi eq, %3, %4 : vector<80x32xi32>
    %c16_i32 = arith.constant 16 : i32
    %6 = vector.broadcast %c16_i32 : i32 to vector<80x1xi32>
    %7 = arith.addi %2, %6 : vector<80x1xi32>
    %8 = vector.broadcast %7 : vector<80x1xi32> to vector<80x32xi32>
    %9 = arith.cmpi eq, %3, %8 : vector<80x32xi32>
    %10 = arith.ori %5, %9 : vector<80x32xi1>
    %11 = arith.extui %10 : vector<80x32xi1> to vector<80x32xi32>
    %12 = arith.sitofp %11 : vector<80x32xi32> to vector<80x32xf32>
    %13 = arith.truncf %12 : vector<80x32xf32> to vector<80x32xbf16>
    %c0_1 = arith.constant 0 : index
    %c0_2 = arith.constant 0 : index
    %14 = vector.load %arg1[%c0_1, %c0_2] : memref<80x16xbf16, #tpu.memory_space<vmem>>, vector<80x16xbf16>
    %c0_3 = arith.constant 0 : index
    %c0_4 = arith.constant 0 : index
    %15 = vector.load %arg3[%c0_3, %c0_4] : memref<16x32xbf16, #tpu.memory_space<vmem>>, vector<16x32xbf16>
    %cst = arith.constant dense<0.000000e+00> : vector<80x32xf32>
    %16 = tpu.matmul %14, %15, %cst {dimension_numbers = #tpu.dot_dimension_numbers<[1], [0], [0], [1], [0, 0, 1, 1], [], []>} : vector<80x16xbf16>, vector<16x32xbf16>, vector<80x32xf32> -> vector<80x32xf32>
    %c0_5 = arith.constant 0 : index
    %c0_6 = arith.constant 0 : index
    %17 = vector.load %arg4[%c0_5, %c0_6] : memref<32x32xbf16, #tpu.memory_space<vmem>>, vector<32x32xbf16>
    %cst_7 = arith.constant dense<0.000000e+00> : vector<80x32xf32>
    %18 = tpu.matmul %13, %17, %cst_7 {dimension_numbers = #tpu.dot_dimension_numbers<[1], [0], [0], [1], [0, 0, 1, 1], [], []>} : vector<80x32xbf16>, vector<32x32xbf16>, vector<80x32xf32> -> vector<80x32xf32>
    %19 = arith.addf %16, %18 : vector<80x32xf32>
    %c0_8 = arith.constant 0 : index
    %c0_9 = arith.constant 0 : index
    %20 = vector.load %arg5[%c0_8, %c0_9] : memref<80x32xf32, #tpu.memory_space<vmem>>, vector<80x32xf32>
    tpu.vector_store %arg5[%c0_8, %c0_9], %19 {strides = array<i32>} : memref<80x32xf32, #tpu.memory_space<vmem>>, vector<80x32xf32>,
    return
  }
  func.func @transform_0(%arg0: i32) -> (i32, i32) {
    %c0_i32 = arith.constant 0 : i32
    %c0_i32_0 = arith.constant 0 : i32
    return %arg0, %c0_i32 : i32, i32
  }
  func.func @transform_1(%arg0: i32) -> (i32, i32) {
    %c0_i32 = arith.constant 0 : i32
    %c0_i32_0 = arith.constant 0 : i32
    return %arg0, %c0_i32 : i32, i32
  }
  func.func @transform_2(%arg0: i32) -> (i32, i32) {
    %c0_i32 = arith.constant 0 : i32
    %c0_i32_0 = arith.constant 0 : i32
    %c0_i32_1 = arith.constant 0 : i32
    return %c0_i32, %c0_i32_0 : i32, i32
  }
  func.func @transform_3(%arg0: i32) -> (i32, i32) {
    %c0_i32 = arith.constant 0 : i32
    %c0_i32_0 = arith.constant 0 : i32
    %c0_i32_1 = arith.constant 0 : i32
    return %c0_i32, %c0_i32_0 : i32, i32
  }
  func.func @transform_4(%arg0: i32) -> (i32, i32) {
    %c0_i32 = arith.constant 0 : i32
    %c0_i32_0 = arith.constant 0 : i32
    return %arg0, %c0_i32 : i32, i32
  }
}

</mosaic_0001>

<llo_original>
// kernel: tpu_custom_call.1
$region0: #{tpu_custom_call.1}
  #allocation0 [shape = 'u32[]', space=smem, size = 0x4, offset = 0x4, fixed_abs, tag = 'smem constant byte address 0x4 - core index']
  #allocation1 [shape = 'u32[144,128]{1,0:T(1,128)}', space=vmem, size = 0x12000, scoped, tag = 'internal scratch']
  %s0 = inlined_call_operand.vmem [shape: bf16[80,16], index: 0, kind: input, shape index: {}]
  %s1 = inlined_call_operand.vmem [shape: s32[80,2], index: 1, kind: input, shape index: {}]
  %s2 = inlined_call_operand.vmem [shape: bf16[16,32], index: 2, kind: input, shape index: {}]
  %s3 = inlined_call_operand.vmem [shape: bf16[32,32], index: 3, kind: input, shape index: {}]
  %s4 = inlined_call_operand.vmem [shape: f32[80,32], index: 4, kind: output, shape index: {}]
  %s5 = sld [smem:[#allocation0]]
  $region26: #{tpu_custom_call.1} parent=0
    _
  %s7 = ssub.s32 1, %s5
  %s8 = scalar_select 0, %s7, %s5
  // Predicated region
  $region2: #{tpu_custom_call.1} parent=0 // pred_check
    _
  $region3: #{tpu_custom_call.1} parent=0 // pred_check_branch
    %10 = sbr.rel (0) target = $region5
  $region4: #{tpu_custom_call.1} parent=0 // pred_region
    _
  $region5: #{tpu_custom_call.1} parent=0 // pred_fallthru
    _
  // Predicated region
  $region6: #{tpu_custom_call.1} parent=0 // pred_check
    _
  $region7: #{tpu_custom_call.1} parent=0 // pred_check_branch
    %12 = sbr.rel (0) target = $region9
  $region8: #{tpu_custom_call.1} parent=0 // pred_region
    _
  $region9: #{tpu_custom_call.1} parent=0 // pred_fallthru
    _
  // Predicated region
  $region10: #{tpu_custom_call.1} parent=0 // pred_check
    _
  $region11: #{tpu_custom_call.1} parent=0 // pred_check_branch
    %14 = sbr.rel (0) target = $region13
  $region12: #{tpu_custom_call.1} parent=0 // pred_region
    _
  $region13: #{tpu_custom_call.1} parent=0 // pred_fallthru
    _
  // Predicated region
  $region14: #{tpu_custom_call.1} parent=0 // pred_check
    _
  $region15: #{tpu_custom_call.1} parent=0 // pred_check_branch
    %16 = sbr.rel (0) target = $region17
  $region16: #{tpu_custom_call.1} parent=0 // pred_region
    _
  $region17: #{tpu_custom_call.1} parent=0 // pred_fallthru
    _
  %v18 = vld [vmem:[%s1] sm:$0xff]
  %v19 = vld [vmem:[%s1 + $0x8] sm:$0xff]
  %v20 = vld [vmem:[%s1 + $0x10] sm:$0xff]
  %v21 = vld [vmem:[%s1 + $0x18] sm:$0xff]
  %v22 = vld [vmem:[%s1 + $0x20] sm:$0xff]
  %v23 = vld [vmem:[%s1 + $0x28] sm:$0xff]
  %v24 = vld [vmem:[%s1 + $0x30] sm:$0xff]
  %v25 = vld [vmem:[%s1 + $0x38] sm:$0xff]
  %v26 = vld [vmem:[%s1 + $0x40] sm:$0xff]
  %v27 = vld [vmem:[%s1 + $0x48] sm:$0xff]
  %v28 = vlaneseq
  %v29 = vand.u32 %v28, 127
  %30 = vset.pattern.permute.xlu0 0
  %31 = vperm.xlu0 %30, %v18
  %v32 = vpop.permute.xlu0 %31
  %33 = vset.pattern.permute.xlu0 0
  %34 = vperm.xlu0 %33, %v19
  %v35 = vpop.permute.xlu0 %34
  %36 = vset.pattern.permute.xlu0 0
  %37 = vperm.xlu0 %36, %v20
  %v38 = vpop.permute.xlu0 %37
  %39 = vset.pattern.permute.xlu0 0
  %40 = vperm.xlu0 %39, %v21
  %v41 = vpop.permute.xlu0 %40
  %42 = vset.pattern.permute.xlu0 0
  %43 = vperm.xlu0 %42, %v22
  %v44 = vpop.permute.xlu0 %43
  %45 = vset.pattern.permute.xlu0 0
  %46 = vperm.xlu0 %45, %v23
  %v47 = vpop.permute.xlu0 %46
  %48 = vset.pattern.permute.xlu0 0
  %49 = vperm.xlu0 %48, %v24
  %v50 = vpop.permute.xlu0 %49
  %51 = vset.pattern.permute.xlu0 0
  %52 = vperm.xlu0 %51, %v25
  %v53 = vpop.permute.xlu0 %52
  %54 = vset.pattern.permute.xlu0 0
  %55 = vperm.xlu0 %54, %v26
  %v56 = vpop.permute.xlu0 %55
  %57 = vset.pattern.permute.xlu0 0
  %58 = vperm.xlu0 %57, %v27
  %v59 = vpop.permute.xlu0 %58
  %vm60 = vcmp.eq.s32.totalorder %v29, %v32
  %vm61 = vcmp.eq.s32.totalorder %v29, %v35
  %vm62 = vcmp.eq.s32.totalorder %v29, %v38
  %vm63 = vcmp.eq.s32.totalorder %v29, %v41
  %vm64 = vcmp.eq.s32.totalorder %v29, %v44
  %vm65 = vcmp.eq.s32.totalorder %v29, %v47
  %vm66 = vcmp.eq.s32.totalorder %v29, %v50
  %vm67 = vcmp.eq.s32.totalorder %v29, %v53
  %vm68 = vcmp.eq.s32.totalorder %v29, %v56
  %vm69 = vcmp.eq.s32.totalorder %v29, %v59
  %v70 = vadd.s32 %v18, 16
  %v71 = vadd.s32 %v19, 16
  %v72 = vadd.s32 %v20, 16
  %v73 = vadd.s32 %v21, 16
  %v74 = vadd.s32 %v22, 16
  %v75 = vadd.s32 %v23, 16
  %v76 = vadd.s32 %v24, 16
  %v77 = vadd.s32 %v25, 16
  %v78 = vadd.s32 %v26, 16
  %v79 = vadd.s32 %v27, 16
  %80 = vset.pattern.permute.xlu0 1
  %81 = vperm.xlu0 %80, %v70
  %v82 = vpop.permute.xlu0 %81
  %83 = vset.pattern.permute.xlu0 1
  %84 = vperm.xlu0 %83, %v71
  %v85 = vpop.permute.xlu0 %84
  %86 = vset.pattern.permute.xlu0 1
  %87 = vperm.xlu0 %86, %v72
  %v88 = vpop.permute.xlu0 %87
  %89 = vset.pattern.permute.xlu0 1
  %90 = vperm.xlu0 %89, %v73
  %v91 = vpop.permute.xlu0 %90
  %92 = vset.pattern.permute.xlu0 1
  %93 = vperm.xlu0 %92, %v74
  %v94 = vpop.permute.xlu0 %93
  %95 = vset.pattern.permute.xlu0 1
  %96 = vperm.xlu0 %95, %v75
  %v97 = vpop.permute.xlu0 %96
  %98 = vset.pattern.permute.xlu0 1
  %99 = vperm.xlu0 %98, %v76
  %v100 = vpop.permute.xlu0 %99
  %101 = vset.pattern.permute.xlu0 1
  %102 = vperm.xlu0 %101, %v77
  %v103 = vpop.permute.xlu0 %102
  %104 = vset.pattern.permute.xlu0 1
  %105 = vperm.xlu0 %104, %v78
  %v106 = vpop.permute.xlu0 %105
  %107 = vset.pattern.permute.xlu0 1
  %108 = vperm.xlu0 %107, %v79
  %v109 = vpop.permute.xlu0 %108
  %vm110 = vcmp.eq.s32.totalorder %v29, %v82
  %vm111 = vcmp.eq.s32.totalorder %v29, %v85
  %vm112 = vcmp.eq.s32.totalorder %v29, %v88
  %vm113 = vcmp.eq.s32.totalorder %v29, %v91
  %vm114 = vcmp.eq.s32.totalorder %v29, %v94
  %vm115 = vcmp.eq.s32.totalorder %v29, %v97
  %vm116 = vcmp.eq.s32.totalorder %v29, %v100
  %vm117 = vcmp.eq.s32.totalorder %v29, %v103
  %vm118 = vcmp.eq.s32.totalorder %v29, %v106
  %vm119 = vcmp.eq.s32.totalorder %v29, %v109
  %vm120 = vmor %vm60, %vm110
  %vm121 = vmor %vm61, %vm111
  %vm122 = vmor %vm62, %vm112
  %vm123 = vmor %vm63, %vm113
  %vm124 = vmor %vm64, %vm114
  %vm125 = vmor %vm65, %vm115
  %vm126 = vmor %vm66, %vm116
  %vm127 = vmor %vm67, %vm117
  %vm128 = vmor %vm68, %vm118
  %vm129 = vmor %vm69, %vm119
  %v130 = vsel %vm120, 1, 0
  %v131 = vsel %vm121, 1, 0
  %v132 = vsel %vm122, 1, 0
  %v133 = vsel %vm123, 1, 0
  %v134 = vsel %vm124, 1, 0
  %v135 = vsel %vm125, 1, 0
  %v136 = vsel %vm126, 1, 0
  %v137 = vsel %vm127, 1, 0
  %v138 = vsel %vm128, 1, 0
  %v139 = vsel %vm129, 1, 0
  %v140 = vcvt.s32.f32 %v130
  %v141 = vcvt.s32.f32 %v131
  %v142 = vcvt.s32.f32 %v132
  %v143 = vcvt.s32.f32 %v133
  %v144 = vcvt.s32.f32 %v134
  %v145 = vcvt.s32.f32 %v135
  %v146 = vcvt.s32.f32 %v136
  %v147 = vcvt.s32.f32 %v137
  %v148 = vcvt.s32.f32 %v138
  %v149 = vcvt.s32.f32 %v139
  %v150 = vpack.c.bf16 %v141, %v140
  %v151 = vpack.c.bf16 %v143, %v142
  %v152 = vpack.c.bf16 %v145, %v144
  %v153 = vpack.c.bf16 %v147, %v146
  %v154 = vpack.c.bf16 %v149, %v148
  %v155 = vld [vmem:[%s0] sm:$0xf]
  %v156 = vld [vmem:[%s0 + $0x4] sm:$0xf]
  %v157 = vld [vmem:[%s0 + $0x8] sm:$0xf]
  %v158 = vld [vmem:[%s0 + $0xc] sm:$0xf]
  %v159 = vld [vmem:[%s0 + $0x10] sm:$0xf]
  %v160 = vld [vmem:[%s0 + $0x14] sm:$0xf]
  %v161 = vld [vmem:[%s0 + $0x18] sm:$0xf]
  %v162 = vld [vmem:[%s0 + $0x1c] sm:$0xf]
  %v163 = vld [vmem:[%s0 + $0x20] sm:$0xf]
  %v164 = vld [vmem:[%s0 + $0x24] sm:$0xf]
  %v165 = vld [vmem:[%s2] sm:$0xf]
  %v166 = vld [vmem:[%s2 + $0x4] sm:$0xf]
  %v167 = vld [vmem:[%s3] sm:$0xf]
  %v168 = vld [vmem:[%s3 + $0x4] sm:$0xf]
  %v169 = vld [vmem:[%s3 + $0x8] sm:$0xf]
  %v170 = vld [vmem:[%s3 + $0xc] sm:$0xf]
  %v175 = vunpack.c.l.b16 %v167
  %v176 = vunpack.c.l.b16 %v168
  %v177 = vunpack.c.l.b16 %v169
  %v178 = vunpack.c.l.b16 %v170
  %v179 = vpack.c.b16 %v176, %v175
  %v180 = vpack.c.b16 %v178, %v177
  %vm183 = vcmask 261120
  %v185 = vsel %vm183, %v150, 0
  %v188 = vsel %vm183, %v151, 0
  %v191 = vsel %vm183, %v152, 0
  %v194 = vsel %vm183, %v153, 0
  %v197 = vsel %vm183, %v154, 0
  %199 = vmatprep.subr.bf16.mxu0 0
  %200 = vmatpush1.bf16.msra.mxu0 %v179
  %201 = vmatprep.subr.bf16.mxu0 0
  %202 = vmatpush1.bf16.msra.mxu0 %v180
  %203 = vmatprep.subr.bf16.mxu0 0
  %204 = vmatpush1.bf16.msra.mxu0 0
  %205 = vmatprep.subr.bf16.mxu0 0
  %206 = vmatpush1.bf16.msra.mxu0 0
  %207 = vmatprep.subr.bf16.mxu0 0
  %208 = vmatpush1.bf16.msra.mxu0 0
  %209 = vmatprep.subr.bf16.mxu0 0
  %210 = vmatpush1.bf16.msra.mxu0 0
  %211 = vmatprep.subr.bf16.mxu0 0
  %212 = vmatpush1.bf16.msra.mxu0 0
  %213 = vmatprep.subr.bf16.mxu0 0
  %214 = vmatpush1.bf16.msra.mxu0 0
  %215 = vmatprep.subr.bf16.mxu0 0
  %216 = vmatpush1.bf16.msra.mxu0 0
  %217 = vmatprep.subr.bf16.mxu0 0
  %218 = vmatpush1.bf16.msra.mxu0 0
  %219 = vmatprep.subr.bf16.mxu0 0
  %220 = vmatpush1.bf16.msra.mxu0 0
  %221 = vmatprep.subr.bf16.mxu0 0
  %222 = vmatpush1.bf16.msra.mxu0 0
  %223 = vmatprep.subr.bf16.mxu0 0
  %224 = vmatpush1.bf16.msra.mxu0 0
  %225 = vmatprep.subr.bf16.mxu0 0
  %226 = vmatpush1.bf16.msra.mxu0 0
  %227 = vmatprep.subr.bf16.mxu0 0
  %228 = vmatpush1.bf16.msra.mxu0 0
  %229 = vmatprep.subr.bf16.mxu0 0
  %230 = vmatpush1.bf16.msra.mxu0 0
  %231 = vmatprep.mubr.bf16.mxu0 0
  %232 = vmatmul.mubr.bf16.gmra.mrb[0].mxu0 %v185
  %v233 = vpop.f32.mrb[0].mxu0
  %v234 = vadd.f32 0.0, %v233
  %v235 = vpop.f32.mrb[0].mxu0
  %v236 = vpop.f32.mrb[0].mxu0
  %v237 = vadd.f32 0.0, %v236
  %v238 = vpop.f32.mrb[0].mxu0
  %239 = vmatprep.mubr.bf16.mxu0 0
  %240 = vmatmul.mubr.bf16.gmra.mrb[0].mxu0 %v188
  %v241 = vpop.f32.mrb[0].mxu0
  %v242 = vadd.f32 0.0, %v241
  %v243 = vpop.f32.mrb[0].mxu0
  %v244 = vpop.f32.mrb[0].mxu0
  %v245 = vadd.f32 0.0, %v244
  %v246 = vpop.f32.mrb[0].mxu0
  %247 = vmatprep.mubr.bf16.mxu0 0
  %248 = vmatmul.mubr.bf16.gmra.mrb[0].mxu0 %v191
  %v249 = vpop.f32.mrb[0].mxu0
  %v250 = vadd.f32 0.0, %v249
  %v251 = vpop.f32.mrb[0].mxu0
  %v252 = vpop.f32.mrb[0].mxu0
  %v253 = vadd.f32 0.0, %v252
  %v254 = vpop.f32.mrb[0].mxu0
  %255 = vmatprep.mubr.bf16.mxu0 0
  %256 = vmatmul.mubr.bf16.gmra.mrb[0].mxu0 %v194
  %v257 = vpop.f32.mrb[0].mxu0
  %v258 = vadd.f32 0.0, %v257
  %v259 = vpop.f32.mrb[0].mxu0
  %v260 = vpop.f32.mrb[0].mxu0
  %v261 = vadd.f32 0.0, %v260
  %v262 = vpop.f32.mrb[0].mxu0
  %263 = vmatprep.mubr.bf16.mxu0 0
  %264 = vmatmul.mubr.bf16.gmra.mrb[0].mxu0 %v197
  %v265 = vpop.f32.mrb[0].mxu0
  %v266 = vadd.f32 0.0, %v265
  %v267 = vpop.f32.mrb[0].mxu0
  %v268 = vpop.f32.mrb[0].mxu0
  %v269 = vadd.f32 0.0, %v268
  %v270 = vpop.f32.mrb[0].mxu0
  %271 = vdwg.mxu0
  %v282 = vunpack.c.l.b16 %v155
  %v283 = vunpack.c.l.b16 %v156
  %v284 = vunpack.c.l.b16 %v157
  %v285 = vunpack.c.l.b16 %v158
  %v286 = vunpack.c.l.b16 %v159
  %v287 = vunpack.c.l.b16 %v160
  %v288 = vunpack.c.l.b16 %v161
  %v289 = vunpack.c.l.b16 %v162
  %v290 = vunpack.c.l.b16 %v163
  %v291 = vunpack.c.l.b16 %v164
  %v292 = vpack.c.b16 %v283, %v282
  %v293 = vpack.c.b16 %v285, %v284
  %v294 = vpack.c.b16 %v287, %v286
  %v295 = vpack.c.b16 %v289, %v288
  %v296 = vpack.c.b16 %v291, %v290
  %v299 = vunpack.c.l.b16 %v165
  %v300 = vunpack.c.l.b16 %v166
  %v301 = vpack.c.b16 %v300, %v299
  %vm303 = vcmask 130048
  %v305 = vsel %vm303, %v292, 0
  %v308 = vsel %vm303, %v293, 0
  %v311 = vsel %vm303, %v294, 0
  %v314 = vsel %vm303, %v295, 0
  %v317 = vsel %vm303, %v296, 0
  %319 = vmatprep.subr.bf16.mxu0 0
  %320 = vmatpush1.bf16.msra.mxu0 %v301
  %321 = vmatprep.subr.bf16.mxu0 0
  %322 = vmatpush1.bf16.msra.mxu0 0
  %323 = vmatprep.subr.bf16.mxu0 0
  %324 = vmatpush1.bf16.msra.mxu0 0
  %325 = vmatprep.subr.bf16.mxu0 0
  %326 = vmatpush1.bf16.msra.mxu0 0
  %327 = vmatprep.subr.bf16.mxu0 0
  %328 = vmatpush1.bf16.msra.mxu0 0
  %329 = vmatprep.subr.bf16.mxu0 0
  %330 = vmatpush1.bf16.msra.mxu0 0
  %331 = vmatprep.subr.bf16.mxu0 0
  %332 = vmatpush1.bf16.msra.mxu0 0
  %333 = vmatprep.subr.bf16.mxu0 0
  %334 = vmatpush1.bf16.msra.mxu0 0
  %335 = vmatprep.subr.bf16.mxu0 0
  %336 = vmatpush1.bf16.msra.mxu0 0
  %337 = vmatprep.subr.bf16.mxu0 0
  %338 = vmatpush1.bf16.msra.mxu0 0
  %339 = vmatprep.subr.bf16.mxu0 0
  %340 = vmatpush1.bf16.msra.mxu0 0
  %341 = vmatprep.subr.bf16.mxu0 0
  %342 = vmatpush1.bf16.msra.mxu0 0
  %343 = vmatprep.subr.bf16.mxu0 0
  %344 = vmatpush1.bf16.msra.mxu0 0
  %345 = vmatprep.subr.bf16.mxu0 0
  %346 = vmatpush1.bf16.msra.mxu0 0
  %347 = vmatprep.subr.bf16.mxu0 0
  %348 = vmatpush1.bf16.msra.mxu0 0
  %349 = vmatprep.subr.bf16.mxu0 0
  %350 = vmatpush1.bf16.msra.mxu0 0
  %351 = vmatprep.mubr.bf16.mxu0 0
  %352 = vmatmul.mubr.bf16.gmra.mrb[0].mxu0 %v305
  %v353 = vpop.f32.mrb[0].mxu0
  %v354 = vadd.f32 %v234, %v353
  %v355 = vpop.f32.mrb[0].mxu0
  %v356 = vpop.f32.mrb[0].mxu0
  %v357 = vadd.f32 %v237, %v356
  %v358 = vpop.f32.mrb[0].mxu0
  %359 = vmatprep.mubr.bf16.mxu0 0
  %360 = vmatmul.mubr.bf16.gmra.mrb[0].mxu0 %v308
  %v361 = vpop.f32.mrb[0].mxu0
  %v362 = vadd.f32 %v242, %v361
  %v363 = vpop.f32.mrb[0].mxu0
  %v364 = vpop.f32.mrb[0].mxu0
  %v365 = vadd.f32 %v245, %v364
  %v366 = vpop.f32.mrb[0].mxu0
  %367 = vmatprep.mubr.bf16.mxu0 0
  %368 = vmatmul.mubr.bf16.gmra.mrb[0].mxu0 %v311
  %v369 = vpop.f32.mrb[0].mxu0
  %v370 = vadd.f32 %v250, %v369
  %v371 = vpop.f32.mrb[0].mxu0
  %v372 = vpop.f32.mrb[0].mxu0
  %v373 = vadd.f32 %v253, %v372
  %v374 = vpop.f32.mrb[0].mxu0
  %375 = vmatprep.mubr.bf16.mxu0 0
  %376 = vmatmul.mubr.bf16.gmra.mrb[0].mxu0 %v314
  %v377 = vpop.f32.mrb[0].mxu0
  %v378 = vadd.f32 %v258, %v377
  %v379 = vpop.f32.mrb[0].mxu0
  %v380 = vpop.f32.mrb[0].mxu0
  %v381 = vadd.f32 %v261, %v380
  %v382 = vpop.f32.mrb[0].mxu0
  %383 = vmatprep.mubr.bf16.mxu0 0
  %384 = vmatmul.mubr.bf16.gmra.mrb[0].mxu0 %v317
  %v385 = vpop.f32.mrb[0].mxu0
  %v386 = vadd.f32 %v266, %v385
  %v387 = vpop.f32.mrb[0].mxu0
  %v388 = vpop.f32.mrb[0].mxu0
  %v389 = vadd.f32 %v269, %v388
  %v390 = vpop.f32.mrb[0].mxu0
  %391 = vdwg.mxu0
  %392 = vst.msk [vmem:[%s4] sm:$0xff] %vm183, %v354
  %393 = vst.msk [vmem:[%s4 + $0x8] sm:$0xff] %vm183, %v357
  %394 = vst.msk [vmem:[%s4 + $0x10] sm:$0xff] %vm183, %v362
  %395 = vst.msk [vmem:[%s4 + $0x18] sm:$0xff] %vm183, %v365
  %396 = vst.msk [vmem:[%s4 + $0x20] sm:$0xff] %vm183, %v370
  %397 = vst.msk [vmem:[%s4 + $0x28] sm:$0xff] %vm183, %v373
  %398 = vst.msk [vmem:[%s4 + $0x30] sm:$0xff] %vm183, %v378
  %399 = vst.msk [vmem:[%s4 + $0x38] sm:$0xff] %vm183, %v381
  %400 = vst.msk [vmem:[%s4 + $0x40] sm:$0xff] %vm183, %v386
  %401 = vst.msk [vmem:[%s4 + $0x48] sm:$0xff] %vm183, %v389
  // Predicated region
  $region18: #{tpu_custom_call.1} parent=0 // pred_check
    _
  $region19: #{tpu_custom_call.1} parent=0 // pred_check_branch
    %403 = sbr.rel (0) target = $region21
  $region20: #{tpu_custom_call.1} parent=0 // pred_region
    _
  $region21: #{tpu_custom_call.1} parent=0 // pred_fallthru
    _
  // Predicated region
  $region22: #{tpu_custom_call.1} parent=0 // pred_check
    _
  $region23: #{tpu_custom_call.1} parent=0 // pred_check_branch
    %405 = sbr.rel (0) target = $region25
  $region24: #{tpu_custom_call.1} parent=0 // pred_region
    _
  $region25: #{tpu_custom_call.1} parent=0 // pred_fallthru
    _

</llo_original>
